<compile_context>
chip_gen: v7x
topology: tpu7x:2x2x1
jax: 0.10.0
libtpu: 0.0.40
codegen_flags: <defaults>
</compile_context>

<pallas_src>
import jax
import jax.numpy as jnp
from jax.experimental import pallas as pl
from jax.experimental.pallas import tpu as pltpu


def _round_up(x: int, m: int) -> int:
    return ((x + m - 1) // m) * m


def _cdiv(a: int, b: int) -> int:
    return (a + b - 1) // b


# ----------------------------------------------------------------------------
# Kernel
# ----------------------------------------------------------------------------
def _swiglu_kernel(x_ref, w1_ref, w2_ref, b1_ref, b2_ref, w3_ref, b3_ref,
                   o_ref, acc_ref):
    # x_ref:   (tm, D)            input dtype (cast in-kernel)
    # w1_ref:  (nc, D, th)        compute dtype (bf16)   -- W1^T, hidden-chunked
    # w2_ref:  (nc, D, th)        compute dtype          -- W2^T
    # b1_ref:  (nc, 1, th)        f32
    # b2_ref:  (nc, 1, th)        f32
    # w3_ref:  (nc, th, Dout_p)   compute dtype          -- W3^T, hidden-chunked
    # b3_ref:  (1, Dout_p)        f32
    # o_ref:   (tm, Dout_p)       output dtype
    # acc_ref: (tm, Dout_p)       f32 VMEM scratch accumulator
    nc = w1_ref.shape[0]
    cdt = w1_ref.dtype

    # In-kernel cast of the activations (VPU work, hidden under the MXU).
    xc = x_ref[...].astype(cdt)

    acc_ref[...] = jnp.zeros_like(acc_ref)

    @pl.loop(0, nc)
    def _(c):
        # First GEMM pair: bf16 operands, f32 accumulation on the MXU.
        x1 = jnp.dot(xc, w1_ref[c], preferred_element_type=jnp.float32)
        x1 = x1 + b1_ref[c]
        x2 = jnp.dot(xc, w2_ref[c], preferred_element_type=jnp.float32)
        x2 = x2 + b2_ref[c]

        # SwiGLU activation in f32 (VPU muls + EUP sigmoid; v5e has no bf16 VPU/EUP).
        hidden = (x1 * jax.nn.sigmoid(x1)) * x2

        # Second GEMM: cast LHS back to bf16, accumulate in the f32 scratch.
        acc_ref[...] += jnp.dot(hidden.astype(cdt), w3_ref[c],
                                preferred_element_type=jnp.float32)

    o_ref[...] = (acc_ref[...] + b3_ref[...]).astype(o_ref.dtype)


# ----------------------------------------------------------------------------
# One-time parameter preparation (do at init, not per forward call)
# ----------------------------------------------------------------------------
def prepare_swiglu_params(w12, b12, w3, b3, *, compute_dtype=jnp.bfloat16,
                          th_target=1024):
    """Transpose / cast / pad nn.Linear params once.

    w12: (2H, D), b12: (2H,), w3: (Dout, H), b3: (Dout,).
    Returns (params_tuple, meta_dict).
    """
    H2, D = w12.shape
    H = H2 // 2
    Dout, Hin = w3.shape
    assert Hin == H, "w3 hidden dim mismatch"

    # Hidden-dimension chunking: th multiple of 128, nc * th >= H.
    H_128 = _round_up(max(H, 128), 128)
    nc = max(1, _cdiv(H_128, th_target))
    th = _round_up(_cdiv(H_128, nc), 128)
    H_pad = nc * th

    Dout_p = _round_up(max(Dout, 128), 128)

    w1 = w12[:H, :]   # (H, D)
    w2 = w12[H:, :]
    b1 = b12[:H]
    b2 = b12[H:]

    def pack_w(w):  # (H, D) -> (nc, D, th) chunks of W^T
        wt = w.T.astype(compute_dtype)                       # (D, H)
        wt = jnp.pad(wt, ((0, 0), (0, H_pad - H)))
        return wt.reshape(D, nc, th).transpose(1, 0, 2)

    def pack_b(b):  # (H,) -> (nc, 1, th), f32
        bf = jnp.pad(b.astype(jnp.float32), (0, H_pad - H))
        return bf.reshape(nc, 1, th)

    w1_r = pack_w(w1)
    w2_r = pack_w(w2)
    b1_r = pack_b(b1)
    b2_r = pack_b(b2)

    w3t = w3.T.astype(compute_dtype)                          # (H, Dout)
    w3t = jnp.pad(w3t, ((0, H_pad - H), (0, Dout_p - Dout)))
    w3_r = w3t.reshape(nc, th, Dout_p)
    b3_r = jnp.pad(b3.astype(jnp.float32), (0, Dout_p - Dout)).reshape(1, Dout_p)

    meta = dict(D=D, H=H, Dout=Dout, Dout_p=Dout_p, nc=nc, th=th,
                compute_dtype=compute_dtype)
    return (w1_r, w2_r, b1_r, b2_r, w3_r, b3_r), meta


def _pick_vmem_limit(est_bytes):
    """Generation-aware VMEM cap (~7/8 of per-core capacity)."""
    cap = 64 * 1024 * 1024
    try:
        info = pltpu.get_tpu_info()
        cap = int(getattr(info, "vmem_capacity_bytes", cap)) or cap
    except Exception:
        pass
    ceiling = cap * 7 // 8
    return int(min(max(est_bytes * 5 // 4, 32 * 1024 * 1024), ceiling))


# ----------------------------------------------------------------------------
# Forward wrapper
# ----------------------------------------------------------------------------
def swiglu_ffn(x, params, meta, *, tm=512, vmem_limit_bytes=None):
    """SwiGLU FFN forward. x: (..., D). Returns (..., Dout) in x.dtype."""
    w1_r, w2_r, b1_r, b2_r, w3_r, b3_r = params
    D, H, Dout, Dout_p = meta["D"], meta["H"], meta["Dout"], meta["Dout_p"]
    nc, th = meta["nc"], meta["th"]
    cdt = meta["compute_dtype"]

    lead = x.shape[:-1]
    assert x.shape[-1] == D
    M = 1
    for s in lead:
        M *= s
    xf = x.reshape(M, D)

    # Token tile: multiple of 128 (MXU / bf16-sublane friendly), <= tm.
    tm_eff = min(tm, _round_up(M, 128))
    Mp = _round_up(M, tm_eff)
    if Mp != M:
        # TODO(synk): rely on Pallas trailing-edge masking instead of padding
        # to avoid this HBM copy for ragged M.
        xf = jnp.pad(xf, ((0, Mp - M), (0, 0)))
    grid = (Mp // tm_eff,)

    cbytes = jnp.dtype(cdt).itemsize
    xbytes = jnp.dtype(x.dtype).itemsize
    H_pad = nc * th
    est_vmem = (
        2 * tm_eff * D * xbytes            # x tile (double-buffered)
        + 2 * tm_eff * Dout_p * xbytes     # out tile (double-buffered)
        + 2 * D * H_pad * cbytes           # w1 + w2 (resident, single buffer)
        + H_pad * Dout_p * cbytes          # w3 (resident, single buffer)
        + (2 * H_pad + Dout_p) * 4         # biases (f32)
        + tm_eff * Dout_p * 4              # f32 accumulator scratch
        + tm_eff * D * cbytes              # in-kernel cast copy of x
        + 3 * tm_eff * th * 4              # x1/x2/hidden f32 per chunk
        + tm_eff * th * cbytes             # hidden bf16 per chunk
    )
    if vmem_limit_bytes is None:
        vmem_limit_bytes = _pick_vmem_limit(est_vmem)

    cost = pl.CostEstimate(
        flops=2 * M * D * 2 * H + 2 * M * H * Dout,
        transcendentals=M * H,
        bytes_accessed=(M * D * xbytes
                        + (2 * D * H_pad + H_pad * Dout_p) * cbytes
                        + (2 * H_pad + Dout_p) * 4
                        + M * Dout * xbytes),
    )

    out_padded = pl.pallas_call(
        _swiglu_kernel,
        out_shape=jax.ShapeDtypeStruct((Mp, Dout_p), x.dtype),
        grid_spec=pltpu.PrefetchScalarGridSpec(
            num_scalar_prefetch=0,
            grid=grid,
            in_specs=[
                pl.BlockSpec((tm_eff, D), lambda i: (i, 0)),
                # Grid-invariant weights / biases: single-buffered, resident.
                pl.BlockSpec(w1_r.shape, lambda i: (0, 0, 0),
                             pipeline_mode=pl.Buffered(1)),
                pl.BlockSpec(w2_r.shape, lambda i: (0, 0, 0),
                             pipeline_mode=pl.Buffered(1)),
                pl.BlockSpec(b1_r.shape, lambda i: (0, 0, 0),
                             pipeline_mode=pl.Buffered(1)),
                pl.BlockSpec(b2_r.shape, lambda i: (0, 0, 0),
                             pipeline_mode=pl.Buffered(1)),
                pl.BlockSpec(w3_r.shape, lambda i: (0, 0, 0),
                             pipeline_mode=pl.Buffered(1)),
                pl.BlockSpec(b3_r.shape, lambda i: (0, 0),
                             pipeline_mode=pl.Buffered(1)),
            ],
            out_specs=pl.BlockSpec((tm_eff, Dout_p), lambda i: (i, 0)),
            scratch_shapes=[pltpu.VMEM((tm_eff, Dout_p), jnp.float32)],
        ),
        compiler_params=pltpu.CompilerParams(
            dimension_semantics=("parallel",),
            vmem_limit_bytes=vmem_limit_bytes,
        ),
        cost_estimate=cost,
    )(xf, w1_r, w2_r, b1_r, b2_r, w3_r, b3_r)

    return out_padded[:M, :Dout].reshape(*lead, Dout)


# ----------------------------------------------------------------------------
# Pure-JAX reference (same bf16-operand / f32-accumulation precision)
# ----------------------------------------------------------------------------
def swiglu_ffn_ref(x, w12, b12, w3, b3, compute_dtype=jnp.bfloat16):
    D = x.shape[-1]
    H = w3.shape[1]
    xc = x.reshape(-1, D).astype(compute_dtype)
    x12 = jnp.dot(xc, w12.T.astype(compute_dtype),
                  preferred_element_type=jnp.float32) + b12.astype(jnp.float32)
    x1, x2 = x12[:, :H], x12[:, H:]
    hidden = (jax.nn.silu(x1) * x2).astype(compute_dtype)
    out = jnp.dot(hidden, w3.T.astype(compute_dtype),
                  preferred_element_type=jnp.float32) + b3.astype(jnp.float32)
    return out.astype(x.dtype).reshape(*x.shape[:-1], w3.shape[0])


if __name__ == "__main__":
    # SwiGLUFFN(in_features=128, hidden_features=128, out_features=128, bias=True)
    B, N, D, H, Dout = 2, 64, 128, 128, 128

    key = jax.random.PRNGKey(0)
    kx, k1, k2, k3, k4 = jax.random.split(key, 5)

    x = jax.random.normal(kx, (B, N, D), dtype=jnp.float32)
    # nn.Linear parameter shapes: w12 (2H, D), b12 (2H,), w3 (Dout, H), b3 (Dout,)
    w12 = jax.random.normal(k1, (2 * H, D), dtype=jnp.float32) * 0.05
    b12 = jax.random.normal(k2, (2 * H,), dtype=jnp.float32) * 0.05
    w3 = jax.random.normal(k3, (Dout, H), dtype=jnp.float32) * 0.05
    b3 = jax.random.normal(k4, (Dout,), dtype=jnp.float32) * 0.05

    # One-time parameter prep (transpose/cast/pad hoisted out of the call path).
    params, meta = prepare_swiglu_params(w12, b12, w3, b3)

    out = swiglu_ffn(x, params, meta)
    out = jax.block_until_ready(out)

    ref = swiglu_ffn_ref(x, w12, b12, w3, b3)
    assert out.shape == (B, N, Dout)
    # bf16 matmul operands with f32 accumulation -> looser tolerance than f32.
    assert jnp.allclose(out, ref, atol=2e-2, rtol=2e-2), "mismatch vs reference"

    print("KERNEL_OK")
</pallas_src>

<mosaic_0001>
module attributes {stable_mosaic.version = 11 : i64} {
  func.func @_swiglu_kernel(%arg0: i32, %arg1: memref<128x128xf32, #tpu.memory_space<vmem>>, %arg2: memref<1x128x128xbf16, #tpu.memory_space<vmem>>, %arg3: memref<1x128x128xbf16, #tpu.memory_space<vmem>>, %arg4: memref<1x1x128xf32, #tpu.memory_space<vmem>>, %arg5: memref<1x1x128xf32, #tpu.memory_space<vmem>>, %arg6: memref<1x128x128xbf16, #tpu.memory_space<vmem>>, %arg7: memref<1x128xf32, #tpu.memory_space<vmem>>, %arg8: memref<128x128xf32, #tpu.memory_space<vmem>>, %arg9: memref<128x128xf32, #tpu.memory_space<vmem>>) attributes {dimension_semantics = [#tpu.dimension_semantics<parallel>], iteration_bounds = array<i64: 1>, scalar_prefetch = 0 : i64, scratch_operands = 1 : i64, tpu.core_type = #tpu.core_type<tc>, window_params = [{transform_indices = @transform_0, window_bounds = array<i64: 128, 128>}, {pipeline_mode = #tpu.pipeline_mode<synchronous>, transform_indices = @transform_1, window_bounds = array<i64: 1, 128, 128>}, {pipeline_mode = #tpu.pipeline_mode<synchronous>, transform_indices = @transform_2, window_bounds = array<i64: 1, 128, 128>}, {pipeline_mode = #tpu.pipeline_mode<synchronous>, transform_indices = @transform_3, window_bounds = array<i64: 1, 1, 128>}, {pipeline_mode = #tpu.pipeline_mode<synchronous>, transform_indices = @transform_4, window_bounds = array<i64: 1, 1, 128>}, {pipeline_mode = #tpu.pipeline_mode<synchronous>, transform_indices = @transform_5, window_bounds = array<i64: 1, 128, 128>}, {pipeline_mode = #tpu.pipeline_mode<synchronous>, transform_indices = @transform_6, window_bounds = array<i64: 1, 128>}, {transform_indices = @transform_7, window_bounds = array<i64: 128, 128>}]} {
    %c0 = arith.constant 0 : index
    %c0_0 = arith.constant 0 : index
    %0 = vector.load %arg1[%c0, %c0_0] : memref<128x128xf32, #tpu.memory_space<vmem>>, vector<128x128xf32>
    %1 = arith.truncf %0 : vector<128x128xf32> to vector<128x128xbf16>
    %cst = arith.constant 0.000000e+00 : f32
    %2 = vector.broadcast %cst : f32 to vector<128x128xf32>
    %c0_1 = arith.constant 0 : index
    %c0_2 = arith.constant 0 : index
    %3 = vector.load %arg9[%c0_1, %c0_2] : memref<128x128xf32, #tpu.memory_space<vmem>>, vector<128x128xf32>
    tpu.vector_store %arg9[%c0_1, %c0_2], %2 {strides = array<i32>} : memref<128x128xf32, #tpu.memory_space<vmem>>, vector<128x128xf32>,
    %c0_i32 = arith.constant 0 : i32
    %c1_i32 = arith.constant 1 : i32
    %4 = arith.muli %c0_i32, %c1_i32 : i32
    %c0_i32_3 = arith.constant 0 : i32
    %5 = arith.addi %c0_i32_3, %4 : i32
    %6 = arith.index_cast %5 : i32 to index
    %c0_4 = arith.constant 0 : index
    %c0_5 = arith.constant 0 : index
    %7 = vector.load %arg2[%6, %c0_4, %c0_5] : memref<1x128x128xbf16, #tpu.memory_space<vmem>>, vector<1x128x128xbf16>
    %8 = vector.shape_cast %7 : vector<1x128x128xbf16> to vector<128x128xbf16>
    %cst_6 = arith.constant dense<0.000000e+00> : vector<128x128xf32>
    %9 = tpu.matmul %1, %8, %cst_6 {dimension_numbers = #tpu.dot_dimension_numbers<[1], [0], [0], [1], [0, 0, 1, 1], [], []>} : vector<128x128xbf16>, vector<128x128xbf16>, vector<128x128xf32> -> vector<128x128xf32>
    %10 = arith.index_cast %5 : i32 to index
    %c0_7 = arith.constant 0 : index
    %c0_8 = arith.constant 0 : index
    %11 = vector.load %arg4[%10, %c0_7, %c0_8] : memref<1x1x128xf32, #tpu.memory_space<vmem>>, vector<1x1x128xf32>
    %12 = vector.shape_cast %11 : vector<1x1x128xf32> to vector<1x128xf32>
    %13 = vector.broadcast %12 : vector<1x128xf32> to vector<128x128xf32>
    %14 = arith.addf %9, %13 : vector<128x128xf32>
    %15 = arith.index_cast %5 : i32 to index
    %c0_9 = arith.constant 0 : index
    %c0_10 = arith.constant 0 : index
    %16 = vector.load %arg3[%15, %c0_9, %c0_10] : memref<1x128x128xbf16, #tpu.memory_space<vmem>>, vector<1x128x128xbf16>
    %17 = vector.shape_cast %16 : vector<1x128x128xbf16> to vector<128x128xbf16>
    %cst_11 = arith.constant dense<0.000000e+00> : vector<128x128xf32>
    %18 = tpu.matmul %1, %17, %cst_11 {dimension_numbers = #tpu.dot_dimension_numbers<[1], [0], [0], [1], [0, 0, 1, 1], [], []>} : vector<128x128xbf16>, vector<128x128xbf16>, vector<128x128xf32> -> vector<128x128xf32>
    %19 = arith.index_cast %5 : i32 to index
    %c0_12 = arith.constant 0 : index
    %c0_13 = arith.constant 0 : index
    %20 = vector.load %arg5[%19, %c0_12, %c0_13] : memref<1x1x128xf32, #tpu.memory_space<vmem>>, vector<1x1x128xf32>
    %21 = vector.shape_cast %20 : vector<1x1x128xf32> to vector<1x128xf32>
    %22 = vector.broadcast %21 : vector<1x128xf32> to vector<128x128xf32>
    %23 = arith.addf %18, %22 : vector<128x128xf32>
    %24 = arith.negf %14 : vector<128x128xf32>
    %25 = math.exp %24 : vector<128x128xf32>
    %cst_14 = arith.constant 1.000000e+00 : f32
    %26 = vector.broadcast %cst_14 : f32 to vector<128x128xf32>
    %27 = arith.addf %26, %25 : vector<128x128xf32>
    %28 = arith.divf %26, %27 : vector<128x128xf32>
    %29 = arith.mulf %14, %28 : vector<128x128xf32>
    %30 = arith.mulf %29, %23 : vector<128x128xf32>
    %c0_15 = arith.constant 0 : index
    %c0_16 = arith.constant 0 : index
    %31 = vector.load %arg9[%c0_15, %c0_16] : memref<128x128xf32, #tpu.memory_space<vmem>>, vector<128x128xf32>
    %32 = arith.truncf %30 : vector<128x128xf32> to vector<128x128xbf16>
    %33 = arith.index_cast %5 : i32 to index
    %c0_17 = arith.constant 0 : index
    %c0_18 = arith.constant 0 : index
    %34 = vector.load %arg6[%33, %c0_17, %c0_18] : memref<1x128x128xbf16, #tpu.memory_space<vmem>>, vector<1x128x128xbf16>
    %35 = vector.shape_cast %34 : vector<1x128x128xbf16> to vector<128x128xbf16>
    %cst_19 = arith.constant dense<0.000000e+00> : vector<128x128xf32>
    %36 = tpu.matmul %32, %35, %cst_19 {dimension_numbers = #tpu.dot_dimension_numbers<[1], [0], [0], [1], [0, 0, 1, 1], [], []>} : vector<128x128xbf16>, vector<128x128xbf16>, vector<128x128xf32> -> vector<128x128xf32>
    %37 = arith.addf %31, %36 : vector<128x128xf32>
    %c0_20 = arith.constant 0 : index
    %c0_21 = arith.constant 0 : index
    %38 = vector.load %arg9[%c0_20, %c0_21] : memref<128x128xf32, #tpu.memory_space<vmem>>, vector<128x128xf32>
    tpu.vector_store %arg9[%c0_20, %c0_21], %37 {strides = array<i32>} : memref<128x128xf32, #tpu.memory_space<vmem>>, vector<128x128xf32>,
    %c1_i32_22 = arith.constant 1 : i32
    %c0_23 = arith.constant 0 : index
    %c0_24 = arith.constant 0 : index
    %39 = vector.load %arg9[%c0_23, %c0_24] : memref<128x128xf32, #tpu.memory_space<vmem>>, vector<128x128xf32>
    %c0_25 = arith.constant 0 : index
    %c0_26 = arith.constant 0 : index
    %40 = vector.load %arg7[%c0_25, %c0_26] : memref<1x128xf32, #tpu.memory_space<vmem>>, vector<1x128xf32>
    %41 = vector.broadcast %40 : vector<1x128xf32> to vector<128x128xf32>
    %42 = arith.addf %39, %41 : vector<128x128xf32>
    %c0_27 = arith.constant 0 : index
    %c0_28 = arith.constant 0 : index
    %43 = vector.load %arg8[%c0_27, %c0_28] : memref<128x128xf32, #tpu.memory_space<vmem>>, vector<128x128xf32>
    tpu.vector_store %arg8[%c0_27, %c0_28], %42 {strides = array<i32>} : memref<128x128xf32, #tpu.memory_space<vmem>>, vector<128x128xf32>,
    return
  }
  func.func @transform_0(%arg0: i32) -> (i32, i32) {
    %c0_i32 = arith.constant 0 : i32
    %c0_i32_0 = arith.constant 0 : i32
    return %arg0, %c0_i32 : i32, i32
  }
  func.func @transform_1(%arg0: i32) -> (i32, i32, i32) {
    %c0_i32 = arith.constant 0 : i32
    %c0_i32_0 = arith.constant 0 : i32
    %c0_i32_1 = arith.constant 0 : i32
    %c0_i32_2 = arith.constant 0 : i32
    return %c0_i32, %c0_i32_0, %c0_i32_1 : i32, i32, i32
  }
  func.func @transform_2(%arg0: i32) -> (i32, i32, i32) {
    %c0_i32 = arith.constant 0 : i32
    %c0_i32_0 = arith.constant 0 : i32
    %c0_i32_1 = arith.constant 0 : i32
    %c0_i32_2 = arith.constant 0 : i32
    return %c0_i32, %c0_i32_0, %c0_i32_1 : i32, i32, i32
  }
  func.func @transform_3(%arg0: i32) -> (i32, i32, i32) {
    %c0_i32 = arith.constant 0 : i32
    %c0_i32_0 = arith.constant 0 : i32
    %c0_i32_1 = arith.constant 0 : i32
    %c0_i32_2 = arith.constant 0 : i32
    return %c0_i32, %c0_i32_0, %c0_i32_1 : i32, i32, i32
  }
  func.func @transform_4(%arg0: i32) -> (i32, i32, i32) {
    %c0_i32 = arith.constant 0 : i32
    %c0_i32_0 = arith.constant 0 : i32
    %c0_i32_1 = arith.constant 0 : i32
    %c0_i32_2 = arith.constant 0 : i32
    return %c0_i32, %c0_i32_0, %c0_i32_1 : i32, i32, i32
  }
  func.func @transform_5(%arg0: i32) -> (i32, i32, i32) {
    %c0_i32 = arith.constant 0 : i32
    %c0_i32_0 = arith.constant 0 : i32
    %c0_i32_1 = arith.constant 0 : i32
    %c0_i32_2 = arith.constant 0 : i32
    return %c0_i32, %c0_i32_0, %c0_i32_1 : i32, i32, i32
  }
  func.func @transform_6(%arg0: i32) -> (i32, i32) {
    %c0_i32 = arith.constant 0 : i32
    %c0_i32_0 = arith.constant 0 : i32
    %c0_i32_1 = arith.constant 0 : i32
    return %c0_i32, %c0_i32_0 : i32, i32
  }
  func.func @transform_7(%arg0: i32) -> (i32, i32) {
    %c0_i32 = arith.constant 0 : i32
    %c0_i32_0 = arith.constant 0 : i32
    return %arg0, %c0_i32 : i32, i32
  }
}

</mosaic_0001>

<llo_original>
// kernel: tpu_custom_call.1
$region0: #{tpu_custom_call.1}
  #allocation0 [shape = 'u32[]', space=smem, size = 0x4, offset = 0x4, fixed_abs, tag = 'smem constant byte address 0x4 - core index']
  #allocation1 [shape = 'u32[144,128]{1,0:T(1,128)}', space=vmem, size = 0x12000, scoped, tag = 'internal scratch']
  #allocation2 [shape = 'f32[128,128]{1,0:T(8,128)}', space=vmem, size = 0x10000, scoped, tag = 'scratch operand']
  %s0 = inlined_call_operand.hbm [shape: f32[128,128], index: 0, kind: input, shape index: {}]
  %s1 = inlined_call_operand.hbm [shape: bf16[1,128,128], index: 1, kind: input, shape index: {}]
  %s2 = inlined_call_operand.hbm [shape: bf16[1,128,128], index: 2, kind: input, shape index: {}]
  %s3 = inlined_call_operand.vmem [shape: f32[1,1,128], index: 3, kind: input, shape index: {}]
  %s4 = inlined_call_operand.vmem [shape: f32[1,1,128], index: 4, kind: input, shape index: {}]
  %s5 = inlined_call_operand.hbm [shape: bf16[1,128,128], index: 5, kind: input, shape index: {}]
  %s6 = inlined_call_operand.vmem [shape: f32[1,128], index: 6, kind: input, shape index: {}]
  %s7 = inlined_call_operand.hbm [shape: f32[128,128], index: 7, kind: output, shape index: {}]
  %s8 = sld [smem:[#allocation0]]
  $region54: #{tpu_custom_call.1} parent=0
    _
  %s10 = ssub.s32 1, %s8
  %s11 = scalar_select 0, %s10, %s8
  $region1: #{tpu_custom_call.1} parent=0
    #allocation3 [shape = 'u8[65536]{0}', space=vmem, size = 0x10000, scoped, tag = 'input window, operand 0, single buffered']
    #allocation4 [shape = 's32[1]{0}', space=sflag, size = 0x4, scoped, tag = 'scoped memory for tpu_custom_call.1']
    #allocation5 [shape = 's32[1]{0}', space=sflag, size = 0x4, scoped, tag = 'scoped memory for tpu_custom_call.1']
    #allocation6 [shape = 'u8[32768]{0}', space=vmem, size = 0x8000, scoped, tag = 'input window, operand 1, single buffered']
    #allocation7 [shape = 's32[1]{0}', space=sflag, size = 0x4, scoped, tag = 'scoped memory for tpu_custom_call.1']
    #allocation8 [shape = 'u8[32768]{0}', space=vmem, size = 0x8000, scoped, tag = 'input window, operand 2, single buffered']
    #allocation9 [shape = 'u8[32768]{0}', space=vmem, size = 0x8000, scoped, tag = 'input window, operand 5, single buffered']
    #allocation10 [shape = 's32[1]{0}', space=sflag, size = 0x4, scoped, tag = 'scoped memory for tpu_custom_call.1']
    #allocation11 [shape = 'u8[65536]{0}', space=vmem, size = 0x10000, scoped, tag = 'output window, operand 0, single buffered']
    %12 = vsyncpa [#allocation4], 0
    %13 = vsyncpa [#allocation7], 0
    %14 = vsyncpa [#allocation10], 0
    %15 = vsyncpa [#allocation5], 0
    // Predicated region
    $region2: #{tpu_custom_call.1} parent=1 // pred_check
      _
    $region3: #{tpu_custom_call.1} parent=1 // pred_check_branch
      %17 = sbr.rel (0) target = $region5
    $region4: #{tpu_custom_call.1} parent=1 // pred_region
      %s19 = ssub.s32 2048, 2048
      %20 = vsyncadd [#allocation4], %s19
      %s21 = sshll.u32 [#allocation3], 4
      %s22 = int_to_ptr.vmem [resolvable:$true] %s21
      %27 = dma.hbm_to_vmem [thread:$0]  %s0, 2048, %s22, [#allocation4], 128, 128, 8
    $region5: #{tpu_custom_call.1} parent=1 // pred_fallthru
      _
    // Predicated region
    $region6: #{tpu_custom_call.1} parent=1 // pred_check
      _
    $region7: #{tpu_custom_call.1} parent=1 // pred_check_branch
      %29 = sbr.rel (0) target = $region9
    $region8: #{tpu_custom_call.1} parent=1 // pred_region
      %s31 = ssub.s32 1024, 1024
      %32 = vsyncadd [#allocation7], %s31
      %s33 = sshll.u32 [#allocation6], 4
      %s34 = int_to_ptr.vmem [resolvable:$true] %s33
      %39 = dma.hbm_to_vmem [thread:$0]  %s1, 1024, %s34, [#allocation7], 64, 64, 4
    $region9: #{tpu_custom_call.1} parent=1 // pred_fallthru
      _
    // Predicated region
    $region10: #{tpu_custom_call.1} parent=1 // pred_check
      _
    $region11: #{tpu_custom_call.1} parent=1 // pred_check_branch
      %41 = sbr.rel (0) target = $region13
    $region12: #{tpu_custom_call.1} parent=1 // pred_region
      %s43 = ssub.s32 1024, 1024
      %44 = vsyncadd [#allocation7], %s43
      %s45 = sshll.u32 [#allocation8], 4
      %s46 = int_to_ptr.vmem [resolvable:$true] %s45
      %51 = dma.hbm_to_vmem [thread:$0]  %s2, 1024, %s46, [#allocation7], 64, 64, 4
    $region13: #{tpu_custom_call.1} parent=1 // pred_fallthru
      _
    // Predicated region
    $region14: #{tpu_custom_call.1} parent=1 // pred_check
      _
    $region15: #{tpu_custom_call.1} parent=1 // pred_check_branch
      %53 = sbr.rel (0) target = $region17
    $region16: #{tpu_custom_call.1} parent=1 // pred_region
      _
    $region17: #{tpu_custom_call.1} parent=1 // pred_fallthru
      _
    // Predicated region
    $region18: #{tpu_custom_call.1} parent=1 // pred_check
      _
    $region19: #{tpu_custom_call.1} parent=1 // pred_check_branch
      %55 = sbr.rel (0) target = $region21
    $region20: #{tpu_custom_call.1} parent=1 // pred_region
      _
    $region21: #{tpu_custom_call.1} parent=1 // pred_fallthru
      _
    // Predicated region
    $region22: #{tpu_custom_call.1} parent=1 // pred_check
      _
    $region23: #{tpu_custom_call.1} parent=1 // pred_check_branch
      %57 = sbr.rel (0) target = $region25
    $region24: #{tpu_custom_call.1} parent=1 // pred_region
      %s59 = ssub.s32 1024, 1024
      %60 = vsyncadd [#allocation10], %s59
      %s61 = sshll.u32 [#allocation9], 4
      %s62 = int_to_ptr.vmem [resolvable:$true] %s61
      %67 = dma.hbm_to_vmem [thread:$0]  %s5, 1024, %s62, [#allocation10], 64, 64, 4
    $region25: #{tpu_custom_call.1} parent=1 // pred_fallthru
      _
    // Predicated region
    $region26: #{tpu_custom_call.1} parent=1 // pred_check
      _
    $region27: #{tpu_custom_call.1} parent=1 // pred_check_branch
      %69 = sbr.rel (0) target = $region29
    $region28: #{tpu_custom_call.1} parent=1 // pred_region
      _
    $region29: #{tpu_custom_call.1} parent=1 // pred_fallthru
      _
    // Predicated region
    $region30: #{tpu_custom_call.1} parent=1 // pred_check
      _
    $region31: #{tpu_custom_call.1} parent=1 // pred_check_branch
      %71 = sbr.rel (0) target = $region33
    $region32: #{tpu_custom_call.1} parent=1 // pred_region
      %72 = dma.done [#allocation4], 2048
    $region33: #{tpu_custom_call.1} parent=1 // pred_fallthru
      _
    // Predicated region
    $region34: #{tpu_custom_call.1} parent=1 // pred_check
      _
    $region35: #{tpu_custom_call.1} parent=1 // pred_check_branch
      %74 = sbr.rel (0) target = $region37
    $region36: #{tpu_custom_call.1} parent=1 // pred_region
      %75 = dma.done [#allocation7], 1024
    $region37: #{tpu_custom_call.1} parent=1 // pred_fallthru
      _
    // Predicated region
    $region38: #{tpu_custom_call.1} parent=1 // pred_check
      _
    $region39: #{tpu_custom_call.1} parent=1 // pred_check_branch
      %77 = sbr.rel (0) target = $region41
    $region40: #{tpu_custom_call.1} parent=1 // pred_region
      %78 = dma.done [#allocation7], 1024
    $region41: #{tpu_custom_call.1} parent=1 // pred_fallthru
      _
    // Predicated region
    $region42: #{tpu_custom_call.1} parent=1 // pred_check
      _
    $region43: #{tpu_custom_call.1} parent=1 // pred_check_branch
      %80 = sbr.rel (0) target = $region45
    $region44: #{tpu_custom_call.1} parent=1 // pred_region
      %81 = dma.done [#allocation10], 1024
    $region45: #{tpu_custom_call.1} parent=1 // pred_fallthru
      _
    %v83 = vld [vmem:[#allocation3] sm:$0xff]
    %v84 = vld [vmem:[#allocation3 + $0x8] sm:$0xff]
    %v85 = vld [vmem:[#allocation3 + $0x10] sm:$0xff]
    %v86 = vld [vmem:[#allocation3 + $0x18] sm:$0xff]
    %v87 = vld [vmem:[#allocation3 + $0x20] sm:$0xff]
    %v88 = vld [vmem:[#allocation3 + $0x28] sm:$0xff]
    %v89 = vld [vmem:[#allocation3 + $0x30] sm:$0xff]
    %v90 = vld [vmem:[#allocation3 + $0x38] sm:$0xff]
    %v91 = vld [vmem:[#allocation3 + $0x40] sm:$0xff]
    %v92 = vld [vmem:[#allocation3 + $0x48] sm:$0xff]
    %v93 = vld [vmem:[#allocation3 + $0x50] sm:$0xff]
    %v94 = vld [vmem:[#allocation3 + $0x58] sm:$0xff]
    %v95 = vld [vmem:[#allocation3 + $0x60] sm:$0xff]
    %v96 = vld [vmem:[#allocation3 + $0x68] sm:$0xff]
    %v97 = vld [vmem:[#allocation3 + $0x70] sm:$0xff]
    %v98 = vld [vmem:[#allocation3 + $0x78] sm:$0xff]
    %v99 = vpack.c.bf16 %v84, %v83
    %v100 = vpack.c.bf16 %v86, %v85
    %v101 = vpack.c.bf16 %v88, %v87
    %v102 = vpack.c.bf16 %v90, %v89
    %v103 = vpack.c.bf16 %v92, %v91
    %v104 = vpack.c.bf16 %v94, %v93
    %v105 = vpack.c.bf16 %v96, %v95
    %v106 = vpack.c.bf16 %v98, %v97
    %107 = vst [vmem:[#allocation2] sm:$0xff] 0.0
    %108 = vst [vmem:[#allocation2 + $0x8] sm:$0xff] 0.0
    %109 = vst [vmem:[#allocation2 + $0x10] sm:$0xff] 0.0
    %110 = vst [vmem:[#allocation2 + $0x18] sm:$0xff] 0.0
    %111 = vst [vmem:[#allocation2 + $0x20] sm:$0xff] 0.0
    %112 = vst [vmem:[#allocation2 + $0x28] sm:$0xff] 0.0
    %113 = vst [vmem:[#allocation2 + $0x30] sm:$0xff] 0.0
    %114 = vst [vmem:[#allocation2 + $0x38] sm:$0xff] 0.0
    %115 = vst [vmem:[#allocation2 + $0x40] sm:$0xff] 0.0
    %116 = vst [vmem:[#allocation2 + $0x48] sm:$0xff] 0.0
    %117 = vst [vmem:[#allocation2 + $0x50] sm:$0xff] 0.0
    %118 = vst [vmem:[#allocation2 + $0x58] sm:$0xff] 0.0
    %119 = vst [vmem:[#allocation2 + $0x60] sm:$0xff] 0.0
    %120 = vst [vmem:[#allocation2 + $0x68] sm:$0xff] 0.0
    %121 = vst [vmem:[#allocation2 + $0x70] sm:$0xff] 0.0
    %122 = vst [vmem:[#allocation2 + $0x78] sm:$0xff] 0.0
    %v123 = vld [vmem:[#allocation6] sm:$0xf]
    %v124 = vld [vmem:[#allocation6 + $0x4] sm:$0xf]
    %v125 = vld [vmem:[#allocation6 + $0x8] sm:$0xf]
    %v126 = vld [vmem:[#allocation6 + $0xc] sm:$0xf]
    %v127 = vld [vmem:[#allocation6 + $0x10] sm:$0xf]
    %v128 = vld [vmem:[#allocation6 + $0x14] sm:$0xf]
    %v129 = vld [vmem:[#allocation6 + $0x18] sm:$0xf]
    %v130 = vld [vmem:[#allocation6 + $0x1c] sm:$0xf]
    %v131 = vld [vmem:[#allocation6 + $0x20] sm:$0xf]
    %v132 = vld [vmem:[#allocation6 + $0x24] sm:$0xf]
    %v133 = vld [vmem:[#allocation6 + $0x28] sm:$0xf]
    %v134 = vld [vmem:[#allocation6 + $0x2c] sm:$0xf]
    %v135 = vld [vmem:[#allocation6 + $0x30] sm:$0xf]
    %v136 = vld [vmem:[#allocation6 + $0x34] sm:$0xf]
    %v137 = vld [vmem:[#allocation6 + $0x38] sm:$0xf]
    %v138 = vld [vmem:[#allocation6 + $0x3c] sm:$0xf]
    %v139 = vld [vmem:[%s3] sm:$0x1]
    %v141 = vlaneseq
    %v142 = vshrl.u32 %v141, 7
    %v143 = vsub.s32 0, %v142
    %v144 = vrot.slane %v139, %v143
    %v162 = vunpack.c.l.b16 %v123
    %v163 = vunpack.c.l.b16 %v124
    %v164 = vunpack.c.l.b16 %v125
    %v165 = vunpack.c.l.b16 %v126
    %v166 = vunpack.c.l.b16 %v127
    %v167 = vunpack.c.l.b16 %v128
    %v168 = vunpack.c.l.b16 %v129
    %v169 = vunpack.c.l.b16 %v130
    %v170 = vunpack.c.l.b16 %v131
    %v171 = vunpack.c.l.b16 %v132
    %v172 = vunpack.c.l.b16 %v133
    %v173 = vunpack.c.l.b16 %v134
    %v174 = vunpack.c.l.b16 %v135
    %v175 = vunpack.c.l.b16 %v136
    %v176 = vunpack.c.l.b16 %v137
    %v177 = vunpack.c.l.b16 %v138
    %v178 = vpack.c.b16 %v163, %v162
    %v179 = vpack.c.b16 %v165, %v164
    %v180 = vpack.c.b16 %v167, %v166
    %v181 = vpack.c.b16 %v169, %v168
    %v182 = vpack.c.b16 %v171, %v170
    %v183 = vpack.c.b16 %v173, %v172
    %v184 = vpack.c.b16 %v175, %v174
    %v185 = vpack.c.b16 %v177, %v176
    %194 = vmatprep.subr.bf16.mxu0 0
    %195 = vmatpush1.bf16.msra.mxu0 %v178
    %196 = vmatprep.subr.bf16.mxu0 0
    %197 = vmatpush1.bf16.msra.mxu0 %v179
    %198 = vmatprep.subr.bf16.mxu0 0
    %199 = vmatpush1.bf16.msra.mxu0 %v180
    %200 = vmatprep.subr.bf16.mxu0 0
    %201 = vmatpush1.bf16.msra.mxu0 %v181
    %202 = vmatprep.subr.bf16.mxu0 0
    %203 = vmatpush1.bf16.msra.mxu0 %v182
    %204 = vmatprep.subr.bf16.mxu0 0
    %205 = vmatpush1.bf16.msra.mxu0 %v183
    %206 = vmatprep.subr.bf16.mxu0 0
    %207 = vmatpush1.bf16.msra.mxu0 %v184
    %208 = vmatprep.subr.bf16.mxu0 0
    %209 = vmatpush1.bf16.msra.mxu0 %v185
    %210 = vmatprep.subr.bf16.mxu0 0
    %211 = vmatpush1.bf16.msra.mxu0 0
    %212 = vmatprep.subr.bf16.mxu0 0
    %213 = vmatpush1.bf16.msra.mxu0 0
    %214 = vmatprep.subr.bf16.mxu0 0
    %215 = vmatpush1.bf16.msra.mxu0 0
    %216 = vmatprep.subr.bf16.mxu0 0
    %217 = vmatpush1.bf16.msra.mxu0 0
    %218 = vmatprep.subr.bf16.mxu0 0
    %219 = vmatpush1.bf16.msra.mxu0 0
    %220 = vmatprep.subr.bf16.mxu0 0
    %221 = vmatpush1.bf16.msra.mxu0 0
    %222 = vmatprep.subr.bf16.mxu0 0
    %223 = vmatpush1.bf16.msra.mxu0 0
    %224 = vmatprep.subr.bf16.mxu0 0
    %225 = vmatpush1.bf16.msra.mxu0 0
    %226 = vmatprep.mubr.bf16.mxu0 0
    %227 = vmatmul.mubr.bf16.gmra.mrb[0].mxu0 %v99
    %v228 = vpop.f32.mrb[0].mxu0
    %v229 = vadd.f32 %v144, %v228
    %v230 = vpop.f32.mrb[0].mxu0
    %v231 = vpop.f32.mrb[0].mxu0
    %v232 = vadd.f32 %v144, %v231
    %v233 = vpop.f32.mrb[0].mxu0
    %234 = vmatprep.mubr.bf16.mxu0 0
    %235 = vmatmul.mubr.bf16.gmra.mrb[0].mxu0 %v100
    %v236 = vpop.f32.mrb[0].mxu0
    %v237 = vadd.f32 %v144, %v236
    %v238 = vpop.f32.mrb[0].mxu0
    %v239 = vpop.f32.mrb[0].mxu0
    %v240 = vadd.f32 %v144, %v239
    %v241 = vpop.f32.mrb[0].mxu0
    %242 = vmatprep.mubr.bf16.mxu0 0
    %243 = vmatmul.mubr.bf16.gmra.mrb[0].mxu0 %v101
    %v244 = vpop.f32.mrb[0].mxu0
    %v245 = vadd.f32 %v144, %v244
    %v246 = vpop.f32.mrb[0].mxu0
    %v247 = vpop.f32.mrb[0].mxu0
    %v248 = vadd.f32 %v144, %v247
    %v249 = vpop.f32.mrb[0].mxu0
    %250 = vmatprep.mubr.bf16.mxu0 0
    %251 = vmatmul.mubr.bf16.gmra.mrb[0].mxu0 %v102
    %v252 = vpop.f32.mrb[0].mxu0
    %v253 = vadd.f32 %v144, %v252
    %v254 = vpop.f32.mrb[0].mxu0
    %v255 = vpop.f32.mrb[0].mxu0
    %v256 = vadd.f32 %v144, %v255
    %v257 = vpop.f32.mrb[0].mxu0
    %258 = vmatprep.mubr.bf16.mxu0 0
    %259 = vmatmul.mubr.bf16.gmra.mrb[0].mxu0 %v103
    %v260 = vpop.f32.mrb[0].mxu0
    %v261 = vadd.f32 %v144, %v260
    %v262 = vpop.f32.mrb[0].mxu0
    %v263 = vpop.f32.mrb[0].mxu0
    %v264 = vadd.f32 %v144, %v263
    %v265 = vpop.f32.mrb[0].mxu0
    %266 = vmatprep.mubr.bf16.mxu0 0
    %267 = vmatmul.mubr.bf16.gmra.mrb[0].mxu0 %v104
    %v268 = vpop.f32.mrb[0].mxu0
    %v269 = vadd.f32 %v144, %v268
    %v270 = vpop.f32.mrb[0].mxu0
    %v271 = vpop.f32.mrb[0].mxu0
    %v272 = vadd.f32 %v144, %v271
    %v273 = vpop.f32.mrb[0].mxu0
    %274 = vmatprep.mubr.bf16.mxu0 0
    %275 = vmatmul.mubr.bf16.gmra.mrb[0].mxu0 %v105
    %v276 = vpop.f32.mrb[0].mxu0
    %v277 = vadd.f32 %v144, %v276
    %v278 = vpop.f32.mrb[0].mxu0
    %v279 = vpop.f32.mrb[0].mxu0
    %v280 = vadd.f32 %v144, %v279
    %v281 = vpop.f32.mrb[0].mxu0
    %282 = vmatprep.mubr.bf16.mxu0 0
    %283 = vmatmul.mubr.bf16.gmra.mrb[0].mxu0 %v106
    %v284 = vpop.f32.mrb[0].mxu0
    %v285 = vadd.f32 %v144, %v284
    %v286 = vpop.f32.mrb[0].mxu0
    %v287 = vpop.f32.mrb[0].mxu0
    %v288 = vadd.f32 %v144, %v287
    %v289 = vpop.f32.mrb[0].mxu0
    %290 = vdwg.mxu0
    %v291 = vld [vmem:[#allocation8] sm:$0xf]
    %v292 = vld [vmem:[#allocation8 + $0x4] sm:$0xf]
    %v293 = vld [vmem:[#allocation8 + $0x8] sm:$0xf]
    %v294 = vld [vmem:[#allocation8 + $0xc] sm:$0xf]
    %v295 = vld [vmem:[#allocation8 + $0x10] sm:$0xf]
    %v296 = vld [vmem:[#allocation8 + $0x14] sm:$0xf]
    %v297 = vld [vmem:[#allocation8 + $0x18] sm:$0xf]
    %v298 = vld [vmem:[#allocation8 + $0x1c] sm:$0xf]
    %v299 = vld [vmem:[#allocation8 + $0x20] sm:$0xf]
    %v300 = vld [vmem:[#allocation8 + $0x24] sm:$0xf]
    %v301 = vld [vmem:[#allocation8 + $0x28] sm:$0xf]
    %v302 = vld [vmem:[#allocation8 + $0x2c] sm:$0xf]
    %v303 = vld [vmem:[#allocation8 + $0x30] sm:$0xf]
    %v304 = vld [vmem:[#allocation8 + $0x34] sm:$0xf]
    %v305 = vld [vmem:[#allocation8 + $0x38] sm:$0xf]
    %v306 = vld [vmem:[#allocation8 + $0x3c] sm:$0xf]
    %v307 = vld [vmem:[%s4] sm:$0x1]
    %v309 = vlaneseq
    %v310 = vshrl.u32 %v309, 7
    %v311 = vsub.s32 0, %v310
    %v312 = vrot.slane %v307, %v311
    %v330 = vunpack.c.l.b16 %v291
    %v331 = vunpack.c.l.b16 %v292
    %v332 = vunpack.c.l.b16 %v293
    %v333 = vunpack.c.l.b16 %v294
    %v334 = vunpack.c.l.b16 %v295
    %v335 = vunpack.c.l.b16 %v296
    %v336 = vunpack.c.l.b16 %v297
    %v337 = vunpack.c.l.b16 %v298
    %v338 = vunpack.c.l.b16 %v299
    %v339 = vunpack.c.l.b16 %v300
    %v340 = vunpack.c.l.b16 %v301
    %v341 = vunpack.c.l.b16 %v302
    %v342 = vunpack.c.l.b16 %v303
    %v343 = vunpack.c.l.b16 %v304
    %v344 = vunpack.c.l.b16 %v305
    %v345 = vunpack.c.l.b16 %v306
    %v346 = vpack.c.b16 %v331, %v330
    %v347 = vpack.c.b16 %v333, %v332
    %v348 = vpack.c.b16 %v335, %v334
    %v349 = vpack.c.b16 %v337, %v336
    %v350 = vpack.c.b16 %v339, %v338
    %v351 = vpack.c.b16 %v341, %v340
    %v352 = vpack.c.b16 %v343, %v342
    %v353 = vpack.c.b16 %v345, %v344
    %362 = vmatprep.subr.bf16.mxu0 0
    %363 = vmatpush1.bf16.msra.mxu0 %v346
    %364 = vmatprep.subr.bf16.mxu0 0
    %365 = vmatpush1.bf16.msra.mxu0 %v347
    %366 = vmatprep.subr.bf16.mxu0 0
    %367 = vmatpush1.bf16.msra.mxu0 %v348
    %368 = vmatprep.subr.bf16.mxu0 0
    %369 = vmatpush1.bf16.msra.mxu0 %v349
    %370 = vmatprep.subr.bf16.mxu0 0
    %371 = vmatpush1.bf16.msra.mxu0 %v350
    %372 = vmatprep.subr.bf16.mxu0 0
    %373 = vmatpush1.bf16.msra.mxu0 %v351
    %374 = vmatprep.subr.bf16.mxu0 0
    %375 = vmatpush1.bf16.msra.mxu0 %v352
    %376 = vmatprep.subr.bf16.mxu0 0
    %377 = vmatpush1.bf16.msra.mxu0 %v353
    %378 = vmatprep.subr.bf16.mxu0 0
    %379 = vmatpush1.bf16.msra.mxu0 0
    %380 = vmatprep.subr.bf16.mxu0 0
    %381 = vmatpush1.bf16.msra.mxu0 0
    %382 = vmatprep.subr.bf16.mxu0 0
    %383 = vmatpush1.bf16.msra.mxu0 0
    %384 = vmatprep.subr.bf16.mxu0 0
    %385 = vmatpush1.bf16.msra.mxu0 0
    %386 = vmatprep.subr.bf16.mxu0 0
    %387 = vmatpush1.bf16.msra.mxu0 0
    %388 = vmatprep.subr.bf16.mxu0 0
    %389 = vmatpush1.bf16.msra.mxu0 0
    %390 = vmatprep.subr.bf16.mxu0 0
    %391 = vmatpush1.bf16.msra.mxu0 0
    %392 = vmatprep.subr.bf16.mxu0 0
    %393 = vmatpush1.bf16.msra.mxu0 0
    %394 = vmatprep.mubr.bf16.mxu0 0
    %395 = vmatmul.mubr.bf16.gmra.mrb[0].mxu0 %v99
    %v396 = vpop.f32.mrb[0].mxu0
    %v397 = vadd.f32 %v312, %v396
    %v398 = vpop.f32.mrb[0].mxu0
    %v399 = vpop.f32.mrb[0].mxu0
    %v400 = vadd.f32 %v312, %v399
    %v401 = vpop.f32.mrb[0].mxu0
    %402 = vmatprep.mubr.bf16.mxu0 0
    %403 = vmatmul.mubr.bf16.gmra.mrb[0].mxu0 %v100
    %v404 = vpop.f32.mrb[0].mxu0
    %v405 = vadd.f32 %v312, %v404
    %v406 = vpop.f32.mrb[0].mxu0
    %v407 = vpop.f32.mrb[0].mxu0
    %v408 = vadd.f32 %v312, %v407
    %v409 = vpop.f32.mrb[0].mxu0
    %410 = vmatprep.mubr.bf16.mxu0 0
    %411 = vmatmul.mubr.bf16.gmra.mrb[0].mxu0 %v101
    %v412 = vpop.f32.mrb[0].mxu0
    %v413 = vadd.f32 %v312, %v412
    %v414 = vpop.f32.mrb[0].mxu0
    %v415 = vpop.f32.mrb[0].mxu0
    %v416 = vadd.f32 %v312, %v415
    %v417 = vpop.f32.mrb[0].mxu0
    %418 = vmatprep.mubr.bf16.mxu0 0
    %419 = vmatmul.mubr.bf16.gmra.mrb[0].mxu0 %v102
    %v420 = vpop.f32.mrb[0].mxu0
    %v421 = vadd.f32 %v312, %v420
    %v422 = vpop.f32.mrb[0].mxu0
    %v423 = vpop.f32.mrb[0].mxu0
    %v424 = vadd.f32 %v312, %v423
    %v425 = vpop.f32.mrb[0].mxu0
    %426 = vmatprep.mubr.bf16.mxu0 0
    %427 = vmatmul.mubr.bf16.gmra.mrb[0].mxu0 %v103
    %v428 = vpop.f32.mrb[0].mxu0
    %v429 = vadd.f32 %v312, %v428
    %v430 = vpop.f32.mrb[0].mxu0
    %v431 = vpop.f32.mrb[0].mxu0
    %v432 = vadd.f32 %v312, %v431
    %v433 = vpop.f32.mrb[0].mxu0
    %434 = vmatprep.mubr.bf16.mxu0 0
    %435 = vmatmul.mubr.bf16.gmra.mrb[0].mxu0 %v104
    %v436 = vpop.f32.mrb[0].mxu0
    %v437 = vadd.f32 %v312, %v436
    %v438 = vpop.f32.mrb[0].mxu0
    %v439 = vpop.f32.mrb[0].mxu0
    %v440 = vadd.f32 %v312, %v439
    %v441 = vpop.f32.mrb[0].mxu0
    %442 = vmatprep.mubr.bf16.mxu0 0
    %443 = vmatmul.mubr.bf16.gmra.mrb[0].mxu0 %v105
    %v444 = vpop.f32.mrb[0].mxu0
    %v445 = vadd.f32 %v312, %v444
    %v446 = vpop.f32.mrb[0].mxu0
    %v447 = vpop.f32.mrb[0].mxu0
    %v448 = vadd.f32 %v312, %v447
    %v449 = vpop.f32.mrb[0].mxu0
    %450 = vmatprep.mubr.bf16.mxu0 0
    %451 = vmatmul.mubr.bf16.gmra.mrb[0].mxu0 %v106
    %v452 = vpop.f32.mrb[0].mxu0
    %v453 = vadd.f32 %v312, %v452
    %v454 = vpop.f32.mrb[0].mxu0
    %v455 = vpop.f32.mrb[0].mxu0
    %v456 = vadd.f32 %v312, %v455
    %v457 = vpop.f32.mrb[0].mxu0
    %458 = vdwg.mxu0
    %v459 = vxor.u32 %v229, 2147483648
    %v460 = vxor.u32 %v232, 2147483648
    %v461 = vxor.u32 %v237, 2147483648
    %v462 = vxor.u32 %v240, 2147483648
    %v463 = vxor.u32 %v245, 2147483648
    %v464 = vxor.u32 %v248, 2147483648
    %v465 = vxor.u32 %v253, 2147483648
    %v466 = vxor.u32 %v256, 2147483648
    %v467 = vxor.u32 %v261, 2147483648
    %v468 = vxor.u32 %v264, 2147483648
    %v469 = vxor.u32 %v269, 2147483648
    %v470 = vxor.u32 %v272, 2147483648
    %v471 = vxor.u32 %v277, 2147483648
    %v472 = vxor.u32 %v280, 2147483648
    %v473 = vxor.u32 %v285, 2147483648
    %v474 = vxor.u32 %v288, 2147483648
    %v475 = vmul.f32 %v459, 1.442695
    %v476 = vpow.pop %v475
    %v477 = vmul.f32 %v460, 1.442695
    %v478 = vpow.pop %v477
    %v479 = vmul.f32 %v461, 1.442695
    %v480 = vpow.pop %v479
    %v481 = vmul.f32 %v462, 1.442695
    %v482 = vpow.pop %v481
    %v483 = vmul.f32 %v463, 1.442695
    %v484 = vpow.pop %v483
    %v485 = vmul.f32 %v464, 1.442695
    %v486 = vpow.pop %v485
    %v487 = vmul.f32 %v465, 1.442695
    %v488 = vpow.pop %v487
    %v489 = vmul.f32 %v466, 1.442695
    %v490 = vpow.pop %v489
    %v491 = vmul.f32 %v467, 1.442695
    %v492 = vpow.pop %v491
    %v493 = vmul.f32 %v468, 1.442695
    %v494 = vpow.pop %v493
    %v495 = vmul.f32 %v469, 1.442695
    %v496 = vpow.pop %v495
    %v497 = vmul.f32 %v470, 1.442695
    %v498 = vpow.pop %v497
    %v499 = vmul.f32 %v471, 1.442695
    %v500 = vpow.pop %v499
    %v501 = vmul.f32 %v472, 1.442695
    %v502 = vpow.pop %v501
    %v503 = vmul.f32 %v473, 1.442695
    %v504 = vpow.pop %v503
    %v505 = vmul.f32 %v474, 1.442695
    %v506 = vpow.pop %v505
    %v507 = vadd.f32 %v476, 1.0
    %v508 = vadd.f32 %v478, 1.0
    %v509 = vadd.f32 %v480, 1.0
    %v510 = vadd.f32 %v482, 1.0
    %v511 = vadd.f32 %v484, 1.0
    %v512 = vadd.f32 %v486, 1.0
    %v513 = vadd.f32 %v488, 1.0
    %v514 = vadd.f32 %v490, 1.0
    %v515 = vadd.f32 %v492, 1.0
    %v516 = vadd.f32 %v494, 1.0
    %v517 = vadd.f32 %v496, 1.0
    %v518 = vadd.f32 %v498, 1.0
    %v519 = vadd.f32 %v500, 1.0
    %v520 = vadd.f32 %v502, 1.0
    %v521 = vadd.f32 %v504, 1.0
    %v522 = vadd.f32 %v506, 1.0
    %v523 = vrcp.pop %v507
    %v524 = vmul.f32 1.0, %v523
    %v525 = vrcp.pop %v508
    %v526 = vmul.f32 1.0, %v525
    %v527 = vrcp.pop %v509
    %v528 = vmul.f32 1.0, %v527
    %v529 = vrcp.pop %v510
    %v530 = vmul.f32 1.0, %v529
    %v531 = vrcp.pop %v511
    %v532 = vmul.f32 1.0, %v531
    %v533 = vrcp.pop %v512
    %v534 = vmul.f32 1.0, %v533
    %v535 = vrcp.pop %v513
    %v536 = vmul.f32 1.0, %v535
    %v537 = vrcp.pop %v514
    %v538 = vmul.f32 1.0, %v537
    %v539 = vrcp.pop %v515
    %v540 = vmul.f32 1.0, %v539
    %v541 = vrcp.pop %v516
    %v542 = vmul.f32 1.0, %v541
    %v543 = vrcp.pop %v517
    %v544 = vmul.f32 1.0, %v543
    %v545 = vrcp.pop %v518
    %v546 = vmul.f32 1.0, %v545
    %v547 = vrcp.pop %v519
    %v548 = vmul.f32 1.0, %v547
    %v549 = vrcp.pop %v520
    %v550 = vmul.f32 1.0, %v549
    %v551 = vrcp.pop %v521
    %v552 = vmul.f32 1.0, %v551
    %v553 = vrcp.pop %v522
    %v554 = vmul.f32 1.0, %v553
    %v555 = vmul.f32 %v229, %v524
    %v556 = vmul.f32 %v232, %v526
    %v557 = vmul.f32 %v237, %v528
    %v558 = vmul.f32 %v240, %v530
    %v559 = vmul.f32 %v245, %v532
    %v560 = vmul.f32 %v248, %v534
    %v561 = vmul.f32 %v253, %v536
    %v562 = vmul.f32 %v256, %v538
    %v563 = vmul.f32 %v261, %v540
    %v564 = vmul.f32 %v264, %v542
    %v565 = vmul.f32 %v269, %v544
    %v566 = vmul.f32 %v272, %v546
    %v567 = vmul.f32 %v277, %v548
    %v568 = vmul.f32 %v280, %v550
    %v569 = vmul.f32 %v285, %v552
    %v570 = vmul.f32 %v288, %v554
    %v571 = vmul.f32 %v555, %v397
    %v572 = vmul.f32 %v556, %v400
    %v573 = vmul.f32 %v557, %v405
    %v574 = vmul.f32 %v558, %v408
    %v575 = vmul.f32 %v559, %v413
    %v576 = vmul.f32 %v560, %v416
    %v577 = vmul.f32 %v561, %v421
    %v578 = vmul.f32 %v562, %v424
    %v579 = vmul.f32 %v563, %v429
    %v580 = vmul.f32 %v564, %v432
    %v581 = vmul.f32 %v565, %v437
    %v582 = vmul.f32 %v566, %v440
    %v583 = vmul.f32 %v567, %v445
    %v584 = vmul.f32 %v568, %v448
    %v585 = vmul.f32 %v569, %v453
    %v586 = vmul.f32 %v570, %v456
    %v587 = vld [vmem:[#allocation2] sm:$0xff]
    %v588 = vld [vmem:[#allocation2 + $0x8] sm:$0xff]
    %v589 = vld [vmem:[#allocation2 + $0x10] sm:$0xff]
    %v590 = vld [vmem:[#allocation2 + $0x18] sm:$0xff]
    %v591 = vld [vmem:[#allocation2 + $0x20] sm:$0xff]
    %v592 = vld [vmem:[#allocation2 + $0x28] sm:$0xff]
    %v593 = vld [vmem:[#allocation2 + $0x30] sm:$0xff]
    %v594 = vld [vmem:[#allocation2 + $0x38] sm:$0xff]
    %v595 = vld [vmem:[#allocation2 + $0x40] sm:$0xff]
    %v596 = vld [vmem:[#allocation2 + $0x48] sm:$0xff]
    %v597 = vld [vmem:[#allocation2 + $0x50] sm:$0xff]
    %v598 = vld [vmem:[#allocation2 + $0x58] sm:$0xff]
    %v599 = vld [vmem:[#allocation2 + $0x60] sm:$0xff]
    %v600 = vld [vmem:[#allocation2 + $0x68] sm:$0xff]
    %v601 = vld [vmem:[#allocation2 + $0x70] sm:$0xff]
    %v602 = vld [vmem:[#allocation2 + $0x78] sm:$0xff]
    %v603 = vpack.c.bf16 %v572, %v571
    %v604 = vpack.c.bf16 %v574, %v573
    %v605 = vpack.c.bf16 %v576, %v575
    %v606 = vpack.c.bf16 %v578, %v577
    %v607 = vpack.c.bf16 %v580, %v579
    %v608 = vpack.c.bf16 %v582, %v581
    %v609 = vpack.c.bf16 %v584, %v583
    %v610 = vpack.c.bf16 %v586, %v585
    %v611 = vld [vmem:[#allocation9] sm:$0xf]
    %v612 = vld [vmem:[#allocation9 + $0x4] sm:$0xf]
    %v613 = vld [vmem:[#allocation9 + $0x8] sm:$0xf]
    %v614 = vld [vmem:[#allocation9 + $0xc] sm:$0xf]
    %v615 = vld [vmem:[#allocation9 + $0x10] sm:$0xf]
    %v616 = vld [vmem:[#allocation9 + $0x14] sm:$0xf]
    %v617 = vld [vmem:[#allocation9 + $0x18] sm:$0xf]
    %v618 = vld [vmem:[#allocation9 + $0x1c] sm:$0xf]
    %v619 = vld [vmem:[#allocation9 + $0x20] sm:$0xf]
    %v620 = vld [vmem:[#allocation9 + $0x24] sm:$0xf]
    %v621 = vld [vmem:[#allocation9 + $0x28] sm:$0xf]
    %v622 = vld [vmem:[#allocation9 + $0x2c] sm:$0xf]
    %v623 = vld [vmem:[#allocation9 + $0x30] sm:$0xf]
    %v624 = vld [vmem:[#allocation9 + $0x34] sm:$0xf]
    %v625 = vld [vmem:[#allocation9 + $0x38] sm:$0xf]
    %v626 = vld [vmem:[#allocation9 + $0x3c] sm:$0xf]
    %v643 = vunpack.c.l.b16 %v611
    %v644 = vunpack.c.l.b16 %v612
    %v645 = vunpack.c.l.b16 %v613
    %v646 = vunpack.c.l.b16 %v614
    %v647 = vunpack.c.l.b16 %v615
    %v648 = vunpack.c.l.b16 %v616
    %v649 = vunpack.c.l.b16 %v617
    %v650 = vunpack.c.l.b16 %v618
    %v651 = vunpack.c.l.b16 %v619
    %v652 = vunpack.c.l.b16 %v620
    %v653 = vunpack.c.l.b16 %v621
    %v654 = vunpack.c.l.b16 %v622
    %v655 = vunpack.c.l.b16 %v623
    %v656 = vunpack.c.l.b16 %v624
    %v657 = vunpack.c.l.b16 %v625
    %v658 = vunpack.c.l.b16 %v626
    %v659 = vpack.c.b16 %v644, %v643
    %v660 = vpack.c.b16 %v646, %v645
    %v661 = vpack.c.b16 %v648, %v647
    %v662 = vpack.c.b16 %v650, %v649
    %v663 = vpack.c.b16 %v652, %v651
    %v664 = vpack.c.b16 %v654, %v653
    %v665 = vpack.c.b16 %v656, %v655
    %v666 = vpack.c.b16 %v658, %v657
    %675 = vmatprep.subr.bf16.mxu0 0
    %676 = vmatpush1.bf16.msra.mxu0 %v659
    %677 = vmatprep.subr.bf16.mxu0 0
    %678 = vmatpush1.bf16.msra.mxu0 %v660
    %679 = vmatprep.subr.bf16.mxu0 0
    %680 = vmatpush1.bf16.msra.mxu0 %v661
    %681 = vmatprep.subr.bf16.mxu0 0
    %682 = vmatpush1.bf16.msra.mxu0 %v662
    %683 = vmatprep.subr.bf16.mxu0 0
    %684 = vmatpush1.bf16.msra.mxu0 %v663
    %685 = vmatprep.subr.bf16.mxu0 0
    %686 = vmatpush1.bf16.msra.mxu0 %v664
    %687 = vmatprep.subr.bf16.mxu0 0
    %688 = vmatpush1.bf16.msra.mxu0 %v665
    %689 = vmatprep.subr.bf16.mxu0 0
    %690 = vmatpush1.bf16.msra.mxu0 %v666
    %691 = vmatprep.subr.bf16.mxu0 0
    %692 = vmatpush1.bf16.msra.mxu0 0
    %693 = vmatprep.subr.bf16.mxu0 0
    %694 = vmatpush1.bf16.msra.mxu0 0
    %695 = vmatprep.subr.bf16.mxu0 0
    %696 = vmatpush1.bf16.msra.mxu0 0
    %697 = vmatprep.subr.bf16.mxu0 0
    %698 = vmatpush1.bf16.msra.mxu0 0
    %699 = vmatprep.subr.bf16.mxu0 0
    %700 = vmatpush1.bf16.msra.mxu0 0
    %701 = vmatprep.subr.bf16.mxu0 0
    %702 = vmatpush1.bf16.msra.mxu0 0
    %703 = vmatprep.subr.bf16.mxu0 0
    %704 = vmatpush1.bf16.msra.mxu0 0
    %705 = vmatprep.subr.bf16.mxu0 0
    %706 = vmatpush1.bf16.msra.mxu0 0
    %707 = vmatprep.mubr.bf16.mxu0 0
    %708 = vmatmul.mubr.bf16.gmra.mrb[0].mxu0 %v603
    %v709 = vpop.f32.mrb[0].mxu0
    %v710 = vadd.f32 0.0, %v709
    %v711 = vpop.f32.mrb[0].mxu0
    %v712 = vpop.f32.mrb[0].mxu0
    %v713 = vadd.f32 0.0, %v712
    %v714 = vpop.f32.mrb[0].mxu0
    %715 = vmatprep.mubr.bf16.mxu0 0
    %716 = vmatmul.mubr.bf16.gmra.mrb[0].mxu0 %v604
    %v717 = vpop.f32.mrb[0].mxu0
    %v718 = vadd.f32 0.0, %v717
    %v719 = vpop.f32.mrb[0].mxu0
    %v720 = vpop.f32.mrb[0].mxu0
    %v721 = vadd.f32 0.0, %v720
    %v722 = vpop.f32.mrb[0].mxu0
    %723 = vmatprep.mubr.bf16.mxu0 0
    %724 = vmatmul.mubr.bf16.gmra.mrb[0].mxu0 %v605
    %v725 = vpop.f32.mrb[0].mxu0
    %v726 = vadd.f32 0.0, %v725
    %v727 = vpop.f32.mrb[0].mxu0
    %v728 = vpop.f32.mrb[0].mxu0
    %v729 = vadd.f32 0.0, %v728
    %v730 = vpop.f32.mrb[0].mxu0
    %731 = vmatprep.mubr.bf16.mxu0 0
    %732 = vmatmul.mubr.bf16.gmra.mrb[0].mxu0 %v606
    %v733 = vpop.f32.mrb[0].mxu0
    %v734 = vadd.f32 0.0, %v733
    %v735 = vpop.f32.mrb[0].mxu0
    %v736 = vpop.f32.mrb[0].mxu0
    %v737 = vadd.f32 0.0, %v736
    %v738 = vpop.f32.mrb[0].mxu0
    %739 = vmatprep.mubr.bf16.mxu0 0
    %740 = vmatmul.mubr.bf16.gmra.mrb[0].mxu0 %v607
    %v741 = vpop.f32.mrb[0].mxu0
    %v742 = vadd.f32 0.0, %v741
    %v743 = vpop.f32.mrb[0].mxu0
    %v744 = vpop.f32.mrb[0].mxu0
    %v745 = vadd.f32 0.0, %v744
    %v746 = vpop.f32.mrb[0].mxu0
    %747 = vmatprep.mubr.bf16.mxu0 0
    %748 = vmatmul.mubr.bf16.gmra.mrb[0].mxu0 %v608
    %v749 = vpop.f32.mrb[0].mxu0
    %v750 = vadd.f32 0.0, %v749
    %v751 = vpop.f32.mrb[0].mxu0
    %v752 = vpop.f32.mrb[0].mxu0
    %v753 = vadd.f32 0.0, %v752
    %v754 = vpop.f32.mrb[0].mxu0
    %755 = vmatprep.mubr.bf16.mxu0 0
    %756 = vmatmul.mubr.bf16.gmra.mrb[0].mxu0 %v609
    %v757 = vpop.f32.mrb[0].mxu0
    %v758 = vadd.f32 0.0, %v757
    %v759 = vpop.f32.mrb[0].mxu0
    %v760 = vpop.f32.mrb[0].mxu0
    %v761 = vadd.f32 0.0, %v760
    %v762 = vpop.f32.mrb[0].mxu0
    %763 = vmatprep.mubr.bf16.mxu0 0
    %764 = vmatmul.mubr.bf16.gmra.mrb[0].mxu0 %v610
    %v765 = vpop.f32.mrb[0].mxu0
    %v766 = vadd.f32 0.0, %v765
    %v767 = vpop.f32.mrb[0].mxu0
    %v768 = vpop.f32.mrb[0].mxu0
    %v769 = vadd.f32 0.0, %v768
    %v770 = vpop.f32.mrb[0].mxu0
    %771 = vdwg.mxu0
    %v772 = vadd.f32 %v587, %v710
    %v773 = vadd.f32 %v588, %v713
    %v774 = vadd.f32 %v589, %v718
    %v775 = vadd.f32 %v590, %v721
    %v776 = vadd.f32 %v591, %v726
    %v777 = vadd.f32 %v592, %v729
    %v778 = vadd.f32 %v593, %v734
    %v779 = vadd.f32 %v594, %v737
    %v780 = vadd.f32 %v595, %v742
    %v781 = vadd.f32 %v596, %v745
    %v782 = vadd.f32 %v597, %v750
    %v783 = vadd.f32 %v598, %v753
    %v784 = vadd.f32 %v599, %v758
    %v785 = vadd.f32 %v600, %v761
    %v786 = vadd.f32 %v601, %v766
    %v787 = vadd.f32 %v602, %v769
    %788 = vst [vmem:[#allocation2] sm:$0xff] %v772
    %789 = vst [vmem:[#allocation2 + $0x8] sm:$0xff] %v773
    %790 = vst [vmem:[#allocation2 + $0x10] sm:$0xff] %v774
    %791 = vst [vmem:[#allocation2 + $0x18] sm:$0xff] %v775
    %792 = vst [vmem:[#allocation2 + $0x20] sm:$0xff] %v776
    %793 = vst [vmem:[#allocation2 + $0x28] sm:$0xff] %v777
    %794 = vst [vmem:[#allocation2 + $0x30] sm:$0xff] %v778
    %795 = vst [vmem:[#allocation2 + $0x38] sm:$0xff] %v779
    %796 = vst [vmem:[#allocation2 + $0x40] sm:$0xff] %v780
    %797 = vst [vmem:[#allocation2 + $0x48] sm:$0xff] %v781
    %798 = vst [vmem:[#allocation2 + $0x50] sm:$0xff] %v782
    %799 = vst [vmem:[#allocation2 + $0x58] sm:$0xff] %v783
    %800 = vst [vmem:[#allocation2 + $0x60] sm:$0xff] %v784
    %801 = vst [vmem:[#allocation2 + $0x68] sm:$0xff] %v785
    %802 = vst [vmem:[#allocation2 + $0x70] sm:$0xff] %v786
    %803 = vst [vmem:[#allocation2 + $0x78] sm:$0xff] %v787
    %v804 = vld [vmem:[#allocation2] sm:$0xff]
    %v805 = vld [vmem:[#allocation2 + $0x8] sm:$0xff]
    %v806 = vld [vmem:[#allocation2 + $0x10] sm:$0xff]
    %v807 = vld [vmem:[#allocation2 + $0x18] sm:$0xff]
    %v808 = vld [vmem:[#allocation2 + $0x20] sm:$0xff]
    %v809 = vld [vmem:[#allocation2 + $0x28] sm:$0xff]
    %v810 = vld [vmem:[#allocation2 + $0x30] sm:$0xff]
    %v811 = vld [vmem:[#allocation2 + $0x38] sm:$0xff]
    %v812 = vld [vmem:[#allocation2 + $0x40] sm:$0xff]
    %v813 = vld [vmem:[#allocation2 + $0x48] sm:$0xff]
    %v814 = vld [vmem:[#allocation2 + $0x50] sm:$0xff]
    %v815 = vld [vmem:[#allocation2 + $0x58] sm:$0xff]
    %v816 = vld [vmem:[#allocation2 + $0x60] sm:$0xff]
    %v817 = vld [vmem:[#allocation2 + $0x68] sm:$0xff]
    %v818 = vld [vmem:[#allocation2 + $0x70] sm:$0xff]
    %v819 = vld [vmem:[#allocation2 + $0x78] sm:$0xff]
    %v820 = vld [vmem:[%s6] sm:$0x1]
    %v822 = vlaneseq
    %v823 = vshrl.u32 %v822, 7
    %v824 = vsub.s32 0, %v823
    %v825 = vrot.slane %v820, %v824
    %v827 = vadd.f32 %v804, %v825
    %v828 = vadd.f32 %v805, %v825
    %v829 = vadd.f32 %v806, %v825
    %v830 = vadd.f32 %v807, %v825
    %v831 = vadd.f32 %v808, %v825
    %v832 = vadd.f32 %v809, %v825
    %v833 = vadd.f32 %v810, %v825
    %v834 = vadd.f32 %v811, %v825
    %v835 = vadd.f32 %v812, %v825
    %v836 = vadd.f32 %v813, %v825
    %v837 = vadd.f32 %v814, %v825
    %v838 = vadd.f32 %v815, %v825
    %v839 = vadd.f32 %v816, %v825
    %v840 = vadd.f32 %v817, %v825
    %v841 = vadd.f32 %v818, %v825
    %v842 = vadd.f32 %v819, %v825
    %843 = vst [vmem:[#allocation11] sm:$0xff] %v827
    %844 = vst [vmem:[#allocation11 + $0x8] sm:$0xff] %v828
    %845 = vst [vmem:[#allocation11 + $0x10] sm:$0xff] %v829
    %846 = vst [vmem:[#allocation11 + $0x18] sm:$0xff] %v830
    %847 = vst [vmem:[#allocation11 + $0x20] sm:$0xff] %v831
    %848 = vst [vmem:[#allocation11 + $0x28] sm:$0xff] %v832
    %849 = vst [vmem:[#allocation11 + $0x30] sm:$0xff] %v833
    %850 = vst [vmem:[#allocation11 + $0x38] sm:$0xff] %v834
    %851 = vst [vmem:[#allocation11 + $0x40] sm:$0xff] %v835
    %852 = vst [vmem:[#allocation11 + $0x48] sm:$0xff] %v836
    %853 = vst [vmem:[#allocation11 + $0x50] sm:$0xff] %v837
    %854 = vst [vmem:[#allocation11 + $0x58] sm:$0xff] %v838
    %855 = vst [vmem:[#allocation11 + $0x60] sm:$0xff] %v839
    %856 = vst [vmem:[#allocation11 + $0x68] sm:$0xff] %v840
    %857 = vst [vmem:[#allocation11 + $0x70] sm:$0xff] %v841
    %858 = vst [vmem:[#allocation11 + $0x78] sm:$0xff] %v842
    // Predicated region
    $region46: #{tpu_custom_call.1} parent=1 // pred_check
      _
    $region47: #{tpu_custom_call.1} parent=1 // pred_check_branch
      %860 = sbr.rel (0) target = $region49
    $region48: #{tpu_custom_call.1} parent=1 // pred_region
      %s862 = ssub.s32 2048, 2048
      %863 = vsyncadd [#allocation5], %s862
      %s864 = sshll.u32 [#allocation11], 4
      %s865 = int_to_ptr.vmem [resolvable:$true] %s864
      %870 = dma.vmem_to_hbm [thread:$0]  %s865, 2048, %s7, [#allocation5], 128, 128, 8
    $region49: #{tpu_custom_call.1} parent=1 // pred_fallthru
      _
    // Predicated region
    $region50: #{tpu_custom_call.1} parent=1 // pred_check
      _
    $region51: #{tpu_custom_call.1} parent=1 // pred_check_branch
      %872 = sbr.rel (0) target = $region53
    $region52: #{tpu_custom_call.1} parent=1 // pred_region
      %873 = dma.done [#allocation5], 2048
    $region53: #{tpu_custom_call.1} parent=1 // pred_fallthru
      _
    %874 = vsyncpa [#allocation4], 1
    %875 = vsyncpa [#allocation7], 1
    %876 = vsyncpa [#allocation10], 1
    %877 = vsyncpa [#allocation5], 1

</llo_original>
